<compile_context>
chip_gen: v6e
topology: v6e:2x2x1
jax: 0.10.0
libtpu: 0.0.40
codegen_flags: <defaults>
</compile_context>

<pallas_src>
import jax
import jax.numpy as jnp
from jax.experimental import pallas as pl
from jax.experimental.pallas import tpu as pltpu


def _bce_binary_gold(pred, gold):
    """PyTorch F.binary_cross_entropy(reduction='none'), log clamped at -100.

    Single-log form; exact for hard 0/1 gold labels (CasRel targets are
    binary).  Do NOT use with soft / label-smoothed targets.
    """
    p = pred.astype(jnp.float32)
    g = gold.astype(jnp.float32)
    p_sel = jnp.where(g > 0.5, p, 1.0 - p)
    # -max(log(x), -100) == min(-log(x), 100)
    return jnp.minimum(-jnp.log(p_sel), 100.0)


def _casrel_loss_kernel(
    sub_h_p_ref, sub_h_g_ref,
    sub_t_p_ref, sub_t_g_ref,
    obj_h_p_ref, obj_h_g_ref,
    obj_t_p_ref, obj_t_g_ref,
    mask_ref, mask_rep_ref,
    num_out_ref, den_out_ref,
):
    """One batch tile -> per-tile partial numerator and partial sum(mask).

    No cross-step state (no shared accumulators), so the single grid axis can
    be marked "parallel" and sharded across TensorCores on v7x; the tiny final
    reduction + divide happens outside the kernel in plain JAX.
    """
    mask = mask_ref[...].astype(jnp.float32)            # (tb, S)
    mask_rep = mask_rep_ref[...].astype(jnp.float32)    # (tb, S*R)

    # Subject heads/tails: (tb, S)
    bce_sub = (_bce_binary_gold(sub_h_p_ref[...], sub_h_g_ref[...])
               + _bce_binary_gold(sub_t_p_ref[...], sub_t_g_ref[...]))

    # Object heads/tails: flat row-major (tb, S*R) -> lane axis is the big dim.
    bce_obj = (_bce_binary_gold(obj_h_p_ref[...], obj_h_g_ref[...])
               + _bce_binary_gold(obj_t_p_ref[...], obj_t_g_ref[...]))

    numer = jnp.sum(bce_sub * mask) + jnp.sum(bce_obj * mask_rep)
    denom = jnp.sum(mask)

    # Lane-dense (1, 128) output slots; the wrapper only consumes lane 0.
    num_out_ref[...] = jnp.full(num_out_ref.shape, numer, jnp.float32)
    den_out_ref[...] = jnp.full(den_out_ref.shape, denom, jnp.float32)


def _vmem_capacity_bytes():
    """Physical VMEM per TensorCore; fall back to 64 MiB (v7x, the smallest)."""
    try:
        cap = int(pltpu.get_tpu_info().vmem_capacity_bytes)
        if cap > 0:
            return cap
    except Exception:
        pass
    return 64 * 1024 * 1024


def _choose_batch_tile(batch, row_bytes, sublane, per_step_budget):
    """Batch tile (second-minor block dim): sublane-aligned, VMEM-budgeted."""
    if batch <= sublane or batch * row_bytes <= (4 << 20):
        # Small problem: one step, full-dim block (exempt from the (8,128) rule).
        return batch
    # Largest sublane-aligned tile within the per-step VMEM budget ...
    tb_cap = max(sublane, per_step_budget // row_bytes // sublane * sublane)
    # ... but keep >= 4 grid steps so double-buffering overlaps DMA & compute.
    tb_overlap = max(sublane, batch // 4 // sublane * sublane)
    return int(min(tb_cap, tb_overlap))


def casrel_myloss(predict, target, *, pad_seq_to_lanes=False):
    """predict/target mirror the PyTorch module's inputs.

    predict: sub_heads (B,S,1), sub_tails (B,S,1),
             obj_heads (B,S,R), obj_tails (B,S,R)   (float32 probabilities)
    target:  sub_heads (B,S), sub_tails (B,S),
             obj_heads (B,S,R), obj_tails (B,S,R), mask (B,S)
             -> golds/mask may (and should) be int8 / bool; upcast in-kernel.
    """
    mask = target["mask"]
    B, S = mask.shape

    def _squeeze_last1(x):
        return jnp.squeeze(x, axis=-1) if (x.ndim == 3 and x.shape[-1] == 1) else x

    sub_h_p = _squeeze_last1(predict["sub_heads"])
    sub_t_p = _squeeze_last1(predict["sub_tails"])
    sub_h_g = target["sub_heads"]
    sub_t_g = target["sub_tails"]
    obj_h_p = predict["obj_heads"]
    obj_t_p = predict["obj_tails"]
    obj_h_g = target["obj_heads"]
    obj_t_g = target["obj_tails"]
    R = obj_h_p.shape[-1]

    # Optional: pad S up to a lane multiple (128).  Off by default because the
    # pad itself is a full HBM read+write of the big obj tensors; prefer
    # emitting lane-aligned S from the model / data pipeline.
    if pad_seq_to_lanes and S % 128 != 0:
        s_pad = (-S) % 128
        pad2 = lambda x: jnp.pad(x, ((0, 0), (0, s_pad)))
        pad3 = lambda x: jnp.pad(x, ((0, 0), (0, s_pad), (0, 0)))
        sub_h_p, sub_t_p = pad2(sub_h_p), pad2(sub_t_p)
        sub_h_g, sub_t_g = pad2(sub_h_g), pad2(sub_t_g)
        mask = pad2(mask)
        obj_h_p, obj_t_p = pad3(obj_h_p), pad3(obj_t_p)
        obj_h_g, obj_t_g = pad3(obj_h_g), pad3(obj_t_g)
        S = S + s_pad

    # Free row-major flatten (no transpose, no relayout in HBM): the lane axis
    # becomes the large S*R dim instead of the small R dim.
    flat = lambda x: x.reshape(B, S * R)
    obj_h_p, obj_t_p = flat(obj_h_p), flat(obj_t_p)
    obj_h_g, obj_t_g = flat(obj_h_g), flat(obj_t_g)

    # Mask matching the flat layout: element s*R + r <- mask[:, s].  One small
    # extra stream (in the mask's own — ideally narrow — dtype) instead of four
    # materialized (B,S,R) transposes.
    mask_rep = jnp.repeat(mask, R, axis=1)

    arrays = [sub_h_p, sub_h_g, sub_t_p, sub_t_g,
              obj_h_p, obj_h_g, obj_t_p, obj_t_g,
              mask, mask_rep]

    # ---- tile selection: VMEM-budgeted per generation, sublane aligned ------
    row_bytes = sum(int(a.shape[1]) * a.dtype.itemsize for a in arrays)
    # Sublane multiple of the narrowest tiled dtype: f32 -> 8, bf16 -> 16, i8 -> 32.
    sublane = max(8, max(32 // a.dtype.itemsize for a in arrays))
    vmem_cap = _vmem_capacity_bytes()                    # 128 MiB v5e/v6e, 64 MiB v7x
    total_budget = min(int(vmem_cap * 0.75), 64 << 20)   # ~48 MiB v7x, 64 MiB v5e/v6e
    per_step_budget = int(total_budget * 0.45)           # x2 double-buffer + headroom
    tb = _choose_batch_tile(B, row_bytes, sublane, per_step_budget)
    num_tiles = (B + tb - 1) // tb
    vmem_limit = int(max(total_budget, 2 * tb * row_bytes + (4 << 20)))

    # Pad batch to a tile multiple with zeros: padded preds stay in [0,1]
    # (p=0, g=0 -> BCE 0, no NaN) and padded mask is 0, so padded rows
    # contribute exactly 0 to both numerator and denominator.
    b_pad = num_tiles * tb - B
    if b_pad:
        arrays = [jnp.pad(a, ((0, b_pad), (0, 0))) for a in arrays]

    in_specs = [pl.BlockSpec((tb, int(a.shape[1])), lambda i: (i, 0))
                for a in arrays]
    # TODO(synk): if profiling still shows exposed DMA on the two f32 obj-pred
    # streams, add pipeline_mode=pl.Buffered(3) to just those BlockSpecs (after
    # re-checking the v7x 64 MiB VMEM budget).
    out_specs = (pl.BlockSpec((1, 128), lambda i: (i, 0)),
                 pl.BlockSpec((1, 128), lambda i: (i, 0)))

    num_out, den_out = pl.pallas_call(
        _casrel_loss_kernel,
        out_shape=(jax.ShapeDtypeStruct((num_tiles, 128), jnp.float32),
                   jax.ShapeDtypeStruct((num_tiles, 128), jnp.float32)),
        grid=(num_tiles,),
        in_specs=in_specs,
        out_specs=out_specs,
        compiler_params=pltpu.CompilerParams(
            dimension_semantics=("parallel",),   # stateless steps -> megacore on v7x
            vmem_limit_bytes=vmem_limit,
        ),
    )(*arrays)

    # Tiny final reduction in plain JAX.  All four terms share the same
    # denominator sum(mask) (matches PyTorch: never sum(mask)*R).
    return jnp.sum(num_out[:, 0]) / jnp.sum(den_out[:, 0])


def _reference_loss(predict, target):
    """Pure-JAX reference replicating the PyTorch forward (two-log BCE form)."""
    def bce(p, g):
        p = p.astype(jnp.float32)
        g = g.astype(jnp.float32)
        log_p = jnp.maximum(jnp.log(p), -100.0)
        log_1mp = jnp.maximum(jnp.log(1.0 - p), -100.0)
        return -(g * log_p + (1.0 - g) * log_1mp)

    def loss_fn(pred, gold, mask):
        if pred.ndim == gold.ndim + 1 and pred.shape[-1] == 1:
            pred = jnp.squeeze(pred, axis=-1)
        l = bce(pred, gold)
        m = mask.astype(jnp.float32)
        if l.ndim == m.ndim + 1:
            m = m[..., None]
        return jnp.sum(l * m) / jnp.sum(mask.astype(jnp.float32))

    return (loss_fn(predict["sub_heads"], target["sub_heads"], target["mask"])
            + loss_fn(predict["sub_tails"], target["sub_tails"], target["mask"])
            + loss_fn(predict["obj_heads"], target["obj_heads"], target["mask"])
            + loss_fn(predict["obj_tails"], target["obj_tails"], target["mask"]))


if __name__ == "__main__":
    B, S, R = 2, 8, 4  # batch, seq_len, num_relations

    key = jax.random.PRNGKey(0)
    ks = jax.random.split(key, 8)

    def probs(k, shape):
        return jax.nn.sigmoid(jax.random.normal(k, shape, jnp.float32))

    def binary_i8(k, shape):
        # Gold labels are exact 0/1 -> int8 cuts their HBM traffic 4x vs f32.
        return (jax.random.uniform(k, shape) > 0.7).astype(jnp.int8)

    predict = {
        "sub_heads": probs(ks[0], (B, S, 1)),
        "sub_tails": probs(ks[1], (B, S, 1)),
        "obj_heads": probs(ks[2], (B, S, R)),
        "obj_tails": probs(ks[3], (B, S, R)),
    }
    # Mask: first few tokens valid per example (attention-mask style), int8.
    mask = (jnp.arange(S)[None, :] < jnp.array([[6], [8]])).astype(jnp.int8)
    target = {
        "sub_heads": binary_i8(ks[4], (B, S)),
        "sub_tails": binary_i8(ks[5], (B, S)),
        "obj_heads": binary_i8(ks[6], (B, S, R)),
        "obj_tails": binary_i8(ks[7], (B, S, R)),
        "mask": mask,
    }

    loss = casrel_myloss(predict, target)
    loss = jax.block_until_ready(loss)

    ref = _reference_loss(predict, target)
    assert jnp.allclose(loss, ref, rtol=1e-5, atol=1e-5), (loss, ref)

    print("KERNEL_OK")
</pallas_src>

<mosaic_0001>
module attributes {stable_mosaic.version = 11 : i64} {
  func.func @_casrel_loss_kernel(%arg0: i32, %arg1: memref<2x8xf32, #tpu.memory_space<vmem>>, %arg2: memref<2x8xi8, #tpu.memory_space<vmem>>, %arg3: memref<2x8xf32, #tpu.memory_space<vmem>>, %arg4: memref<2x8xi8, #tpu.memory_space<vmem>>, %arg5: memref<2x32xf32, #tpu.memory_space<vmem>>, %arg6: memref<2x32xi8, #tpu.memory_space<vmem>>, %arg7: memref<2x32xf32, #tpu.memory_space<vmem>>, %arg8: memref<2x32xi8, #tpu.memory_space<vmem>>, %arg9: memref<2x8xi8, #tpu.memory_space<vmem>>, %arg10: memref<2x32xi8, #tpu.memory_space<vmem>>, %arg11: memref<1x128xf32, #tpu.memory_space<vmem>>, %arg12: memref<1x128xf32, #tpu.memory_space<vmem>>) attributes {dimension_semantics = [#tpu.dimension_semantics<parallel>], iteration_bounds = array<i64: 1>, scalar_prefetch = 0 : i64, scratch_operands = 0 : i64, tpu.core_type = #tpu.core_type<tc>, window_params = [{transform_indices = @transform_0, window_bounds = array<i64: 2, 8>}, {transform_indices = @transform_1, window_bounds = array<i64: 2, 8>}, {transform_indices = @transform_2, window_bounds = array<i64: 2, 8>}, {transform_indices = @transform_3, window_bounds = array<i64: 2, 8>}, {transform_indices = @transform_4, window_bounds = array<i64: 2, 32>}, {transform_indices = @transform_5, window_bounds = array<i64: 2, 32>}, {transform_indices = @transform_6, window_bounds = array<i64: 2, 32>}, {transform_indices = @transform_7, window_bounds = array<i64: 2, 32>}, {transform_indices = @transform_8, window_bounds = array<i64: 2, 8>}, {transform_indices = @transform_9, window_bounds = array<i64: 2, 32>}, {transform_indices = @transform_10, window_bounds = array<i64: 1, 128>}, {transform_indices = @transform_11, window_bounds = array<i64: 1, 128>}]} {
    %c0 = arith.constant 0 : index
    %c0_0 = arith.constant 0 : index
    %0 = vector.load %arg9[%c0, %c0_0] : memref<2x8xi8, #tpu.memory_space<vmem>>, vector<2x8xi8>
    %1 = arith.sitofp %0 : vector<2x8xi8> to vector<2x8xf32>
    %c0_1 = arith.constant 0 : index
    %c0_2 = arith.constant 0 : index
    %2 = vector.load %arg10[%c0_1, %c0_2] : memref<2x32xi8, #tpu.memory_space<vmem>>, vector<2x32xi8>
    %3 = arith.sitofp %2 : vector<2x32xi8> to vector<2x32xf32>
    %c0_3 = arith.constant 0 : index
    %c0_4 = arith.constant 0 : index
    %4 = vector.load %arg1[%c0_3, %c0_4] : memref<2x8xf32, #tpu.memory_space<vmem>>, vector<2x8xf32>
    %c0_5 = arith.constant 0 : index
    %c0_6 = arith.constant 0 : index
    %5 = vector.load %arg2[%c0_5, %c0_6] : memref<2x8xi8, #tpu.memory_space<vmem>>, vector<2x8xi8>
    %6 = arith.sitofp %5 : vector<2x8xi8> to vector<2x8xf32>
    %cst = arith.constant 5.000000e-01 : f32
    %7 = vector.broadcast %cst : f32 to vector<2x8xf32>
    %8 = arith.cmpf ogt, %6, %7 : vector<2x8xf32>
    %cst_7 = arith.constant 1.000000e+00 : f32
    %9 = vector.broadcast %cst_7 : f32 to vector<2x8xf32>
    %10 = arith.subf %9, %4 : vector<2x8xf32>
    %11 = arith.select %8, %4, %10 : vector<2x8xi1>, vector<2x8xf32>
    %12 = math.log %11 : vector<2x8xf32>
    %cst_8 = arith.constant 0.000000e+00 : f32
    %13 = vector.broadcast %cst_8 : f32 to vector<2x8xf32>
    %14 = arith.subf %13, %12 : vector<2x8xf32>
    %cst_9 = arith.constant 1.000000e+02 : f32
    %15 = vector.broadcast %cst_9 : f32 to vector<2x8xf32>
    %16 = arith.minimumf %14, %15 : vector<2x8xf32>
    %c0_10 = arith.constant 0 : index
    %c0_11 = arith.constant 0 : index
    %17 = vector.load %arg3[%c0_10, %c0_11] : memref<2x8xf32, #tpu.memory_space<vmem>>, vector<2x8xf32>
    %c0_12 = arith.constant 0 : index
    %c0_13 = arith.constant 0 : index
    %18 = vector.load %arg4[%c0_12, %c0_13] : memref<2x8xi8, #tpu.memory_space<vmem>>, vector<2x8xi8>
    %19 = arith.sitofp %18 : vector<2x8xi8> to vector<2x8xf32>
    %cst_14 = arith.constant 5.000000e-01 : f32
    %20 = vector.broadcast %cst_14 : f32 to vector<2x8xf32>
    %21 = arith.cmpf ogt, %19, %20 : vector<2x8xf32>
    %cst_15 = arith.constant 1.000000e+00 : f32
    %22 = vector.broadcast %cst_15 : f32 to vector<2x8xf32>
    %23 = arith.subf %22, %17 : vector<2x8xf32>
    %24 = arith.select %21, %17, %23 : vector<2x8xi1>, vector<2x8xf32>
    %25 = math.log %24 : vector<2x8xf32>
    %cst_16 = arith.constant 0.000000e+00 : f32
    %26 = vector.broadcast %cst_16 : f32 to vector<2x8xf32>
    %27 = arith.subf %26, %25 : vector<2x8xf32>
    %cst_17 = arith.constant 1.000000e+02 : f32
    %28 = vector.broadcast %cst_17 : f32 to vector<2x8xf32>
    %29 = arith.minimumf %27, %28 : vector<2x8xf32>
    %30 = arith.addf %16, %29 : vector<2x8xf32>
    %c0_18 = arith.constant 0 : index
    %c0_19 = arith.constant 0 : index
    %31 = vector.load %arg5[%c0_18, %c0_19] : memref<2x32xf32, #tpu.memory_space<vmem>>, vector<2x32xf32>
    %c0_20 = arith.constant 0 : index
    %c0_21 = arith.constant 0 : index
    %32 = vector.load %arg6[%c0_20, %c0_21] : memref<2x32xi8, #tpu.memory_space<vmem>>, vector<2x32xi8>
    %33 = arith.sitofp %32 : vector<2x32xi8> to vector<2x32xf32>
    %cst_22 = arith.constant 5.000000e-01 : f32
    %34 = vector.broadcast %cst_22 : f32 to vector<2x32xf32>
    %35 = arith.cmpf ogt, %33, %34 : vector<2x32xf32>
    %cst_23 = arith.constant 1.000000e+00 : f32
    %36 = vector.broadcast %cst_23 : f32 to vector<2x32xf32>
    %37 = arith.subf %36, %31 : vector<2x32xf32>
    %38 = arith.select %35, %31, %37 : vector<2x32xi1>, vector<2x32xf32>
    %39 = math.log %38 : vector<2x32xf32>
    %cst_24 = arith.constant 0.000000e+00 : f32
    %40 = vector.broadcast %cst_24 : f32 to vector<2x32xf32>
    %41 = arith.subf %40, %39 : vector<2x32xf32>
    %cst_25 = arith.constant 1.000000e+02 : f32
    %42 = vector.broadcast %cst_25 : f32 to vector<2x32xf32>
    %43 = arith.minimumf %41, %42 : vector<2x32xf32>
    %c0_26 = arith.constant 0 : index
    %c0_27 = arith.constant 0 : index
    %44 = vector.load %arg7[%c0_26, %c0_27] : memref<2x32xf32, #tpu.memory_space<vmem>>, vector<2x32xf32>
    %c0_28 = arith.constant 0 : index
    %c0_29 = arith.constant 0 : index
    %45 = vector.load %arg8[%c0_28, %c0_29] : memref<2x32xi8, #tpu.memory_space<vmem>>, vector<2x32xi8>
    %46 = arith.sitofp %45 : vector<2x32xi8> to vector<2x32xf32>
    %cst_30 = arith.constant 5.000000e-01 : f32
    %47 = vector.broadcast %cst_30 : f32 to vector<2x32xf32>
    %48 = arith.cmpf ogt, %46, %47 : vector<2x32xf32>
    %cst_31 = arith.constant 1.000000e+00 : f32
    %49 = vector.broadcast %cst_31 : f32 to vector<2x32xf32>
    %50 = arith.subf %49, %44 : vector<2x32xf32>
    %51 = arith.select %48, %44, %50 : vector<2x32xi1>, vector<2x32xf32>
    %52 = math.log %51 : vector<2x32xf32>
    %cst_32 = arith.constant 0.000000e+00 : f32
    %53 = vector.broadcast %cst_32 : f32 to vector<2x32xf32>
    %54 = arith.subf %53, %52 : vector<2x32xf32>
    %cst_33 = arith.constant 1.000000e+02 : f32
    %55 = vector.broadcast %cst_33 : f32 to vector<2x32xf32>
    %56 = arith.minimumf %54, %55 : vector<2x32xf32>
    %57 = arith.addf %43, %56 : vector<2x32xf32>
    %58 = arith.mulf %30, %1 : vector<2x8xf32>
    %59 = vector.shape_cast %58 : vector<2x8xf32> to vector<1x2x8xf32>
    %cst_34 = arith.constant dense<0.000000e+00> : vector<1xf32>
    %60 = vector.multi_reduction <add>, %59, %cst_34 [1, 2] : vector<1x2x8xf32> to vector<1xf32>
    %61 = vector.shape_cast %60 : vector<1xf32> to vector<1x1x1xf32>
    %62 = vector.extract %61[0, 0, 0] : f32 from vector<1x1x1xf32>
    %63 = arith.mulf %57, %3 : vector<2x32xf32>
    %64 = vector.shape_cast %63 : vector<2x32xf32> to vector<1x2x32xf32>
    %cst_35 = arith.constant dense<0.000000e+00> : vector<1xf32>
    %65 = vector.multi_reduction <add>, %64, %cst_35 [1, 2] : vector<1x2x32xf32> to vector<1xf32>
    %66 = vector.shape_cast %65 : vector<1xf32> to vector<1x1x1xf32>
    %67 = vector.extract %66[0, 0, 0] : f32 from vector<1x1x1xf32>
    %68 = arith.addf %62, %67 : f32
    %69 = vector.shape_cast %1 : vector<2x8xf32> to vector<1x2x8xf32>
    %cst_36 = arith.constant dense<0.000000e+00> : vector<1xf32>
    %70 = vector.multi_reduction <add>, %69, %cst_36 [1, 2] : vector<1x2x8xf32> to vector<1xf32>
    %71 = vector.shape_cast %70 : vector<1xf32> to vector<1x1x1xf32>
    %72 = vector.extract %71[0, 0, 0] : f32 from vector<1x1x1xf32>
    %73 = vector.broadcast %68 : f32 to vector<1x128xf32>
    %c0_37 = arith.constant 0 : index
    %c0_38 = arith.constant 0 : index
    %74 = vector.load %arg11[%c0_37, %c0_38] : memref<1x128xf32, #tpu.memory_space<vmem>>, vector<1x128xf32>
    tpu.vector_store %arg11[%c0_37, %c0_38], %73 {strides = array<i32>} : memref<1x128xf32, #tpu.memory_space<vmem>>, vector<1x128xf32>,
    %75 = vector.broadcast %72 : f32 to vector<1x128xf32>
    %c0_39 = arith.constant 0 : index
    %c0_40 = arith.constant 0 : index
    %76 = vector.load %arg12[%c0_39, %c0_40] : memref<1x128xf32, #tpu.memory_space<vmem>>, vector<1x128xf32>
    tpu.vector_store %arg12[%c0_39, %c0_40], %75 {strides = array<i32>} : memref<1x128xf32, #tpu.memory_space<vmem>>, vector<1x128xf32>,
    return
  }
  func.func @transform_0(%arg0: i32) -> (i32, i32) {
    %c0_i32 = arith.constant 0 : i32
    %c0_i32_0 = arith.constant 0 : i32
    return %arg0, %c0_i32 : i32, i32
  }
  func.func @transform_1(%arg0: i32) -> (i32, i32) {
    %c0_i32 = arith.constant 0 : i32
    %c0_i32_0 = arith.constant 0 : i32
    return %arg0, %c0_i32 : i32, i32
  }
  func.func @transform_2(%arg0: i32) -> (i32, i32) {
    %c0_i32 = arith.constant 0 : i32
    %c0_i32_0 = arith.constant 0 : i32
    return %arg0, %c0_i32 : i32, i32
  }
  func.func @transform_3(%arg0: i32) -> (i32, i32) {
    %c0_i32 = arith.constant 0 : i32
    %c0_i32_0 = arith.constant 0 : i32
    return %arg0, %c0_i32 : i32, i32
  }
  func.func @transform_4(%arg0: i32) -> (i32, i32) {
    %c0_i32 = arith.constant 0 : i32
    %c0_i32_0 = arith.constant 0 : i32
    return %arg0, %c0_i32 : i32, i32
  }
  func.func @transform_5(%arg0: i32) -> (i32, i32) {
    %c0_i32 = arith.constant 0 : i32
    %c0_i32_0 = arith.constant 0 : i32
    return %arg0, %c0_i32 : i32, i32
  }
  func.func @transform_6(%arg0: i32) -> (i32, i32) {
    %c0_i32 = arith.constant 0 : i32
    %c0_i32_0 = arith.constant 0 : i32
    return %arg0, %c0_i32 : i32, i32
  }
  func.func @transform_7(%arg0: i32) -> (i32, i32) {
    %c0_i32 = arith.constant 0 : i32
    %c0_i32_0 = arith.constant 0 : i32
    return %arg0, %c0_i32 : i32, i32
  }
  func.func @transform_8(%arg0: i32) -> (i32, i32) {
    %c0_i32 = arith.constant 0 : i32
    %c0_i32_0 = arith.constant 0 : i32
    return %arg0, %c0_i32 : i32, i32
  }
  func.func @transform_9(%arg0: i32) -> (i32, i32) {
    %c0_i32 = arith.constant 0 : i32
    %c0_i32_0 = arith.constant 0 : i32
    return %arg0, %c0_i32 : i32, i32
  }
  func.func @transform_10(%arg0: i32) -> (i32, i32) {
    %c0_i32 = arith.constant 0 : i32
    %c0_i32_0 = arith.constant 0 : i32
    return %arg0, %c0_i32 : i32, i32
  }
  func.func @transform_11(%arg0: i32) -> (i32, i32) {
    %c0_i32 = arith.constant 0 : i32
    %c0_i32_0 = arith.constant 0 : i32
    return %arg0, %c0_i32 : i32, i32
  }
}

</mosaic_0001>

<llo_original>
// kernel: tpu_custom_call.1
$region0: #{tpu_custom_call.1}
  #allocation0 [shape = 'u32[]', space=smem, size = 0x4, offset = 0x4, fixed_abs, tag = 'smem constant byte address 0x4 - core index']
  #allocation1 [shape = 'u32[144,128]{1,0:T(1,128)}', space=vmem, size = 0x12000, scoped, tag = 'internal scratch']
  %s0 = inlined_call_operand.hbm [shape: f32[2,8], index: 0, kind: input, shape index: {}]
  %s1 = inlined_call_operand.vmem [shape: s8[2,8], index: 1, kind: input, shape index: {}]
  %s2 = inlined_call_operand.vmem [shape: f32[2,8], index: 2, kind: input, shape index: {}]
  %s3 = inlined_call_operand.hbm [shape: s8[2,8], index: 3, kind: input, shape index: {}]
  %s4 = inlined_call_operand.vmem [shape: f32[2,32], index: 4, kind: input, shape index: {}]
  %s5 = inlined_call_operand.vmem [shape: s8[2,32], index: 5, kind: input, shape index: {}]
  %s6 = inlined_call_operand.vmem [shape: f32[2,32], index: 6, kind: input, shape index: {}]
  %s7 = inlined_call_operand.vmem [shape: s8[2,32], index: 7, kind: input, shape index: {}]
  %s8 = inlined_call_operand.vmem [shape: s8[2,8], index: 8, kind: input, shape index: {}]
  %s9 = inlined_call_operand.vmem [shape: s8[2,32], index: 9, kind: input, shape index: {}]
  %s10 = inlined_call_operand.hbm [shape: f32[1,128], index: 10, kind: output, shape index: {0}]
  %s11 = inlined_call_operand.hbm [shape: f32[1,128], index: 11, kind: output, shape index: {1}]
  %12 = xla_tuple %s10, %s11
  %s13 = sld [smem:[#allocation0]]
  $region66: #{tpu_custom_call.1} parent=0
    _
  %s15 = ssub.s32 1, %s13
  %s16 = scalar_select 0, %s15, %s13
  $region1: #{tpu_custom_call.1} parent=0
    #allocation2 [shape = 'u8[1024]{0}', space=vmem, size = 0x400, scoped, tag = 'input window, operand 0, single buffered']
    #allocation3 [shape = 's32[1]{0}', space=sflag, size = 0x4, scoped, tag = 'scoped memory for tpu_custom_call.1']
    #allocation4 [shape = 's32[1]{0}', space=sflag, size = 0x4, scoped, tag = 'scoped memory for tpu_custom_call.1']
    #allocation5 [shape = 'u8[512]{0}', space=vmem, size = 0x400, scoped, tag = 'input window, operand 3, single buffered']
    #allocation6 [shape = 's32[1]{0}', space=sflag, size = 0x4, scoped, tag = 'scoped memory for tpu_custom_call.1']
    #allocation7 [shape = 'u8[512]{0}', space=vmem, size = 0x400, scoped, tag = 'output window, operand 0, single buffered']
    #allocation8 [shape = 'u8[512]{0}', space=vmem, size = 0x400, scoped, tag = 'output window, operand 1, single buffered']
    #allocation9 [shape = 's32[1]{0}', space=sflag, size = 0x4, scoped, tag = 'scoped memory for tpu_custom_call.1']
    %17 = vsyncpa [#allocation3], 0
    %18 = vsyncpa [#allocation6], 0
    %19 = vsyncpa [#allocation4], 0
    %20 = vsyncpa [#allocation9], 0
    // Predicated region
    $region2: #{tpu_custom_call.1} parent=1 // pred_check
      _
    $region3: #{tpu_custom_call.1} parent=1 // pred_check_branch
      %22 = sbr.rel (0) target = $region5
    $region4: #{tpu_custom_call.1} parent=1 // pred_region
      %s24 = ssub.s32 32, 32
      %25 = vsyncadd [#allocation3], %s24
      %s27 = sshll.u32 [#allocation2], 4
      %s28 = int_to_ptr.vmem [resolvable:$true] %s27
      %30 = dma.hbm_to_vmem [thread:$0]  %s0, 32, %s28, [#allocation3]
    $region5: #{tpu_custom_call.1} parent=1 // pred_fallthru
      _
    // Predicated region
    $region6: #{tpu_custom_call.1} parent=1 // pred_check
      _
    $region7: #{tpu_custom_call.1} parent=1 // pred_check_branch
      %32 = sbr.rel (0) target = $region9
    $region8: #{tpu_custom_call.1} parent=1 // pred_region
      _
    $region9: #{tpu_custom_call.1} parent=1 // pred_fallthru
      _
    // Predicated region
    $region10: #{tpu_custom_call.1} parent=1 // pred_check
      _
    $region11: #{tpu_custom_call.1} parent=1 // pred_check_branch
      %34 = sbr.rel (0) target = $region13
    $region12: #{tpu_custom_call.1} parent=1 // pred_region
      _
    $region13: #{tpu_custom_call.1} parent=1 // pred_fallthru
      _
    // Predicated region
    $region14: #{tpu_custom_call.1} parent=1 // pred_check
      _
    $region15: #{tpu_custom_call.1} parent=1 // pred_check_branch
      %36 = sbr.rel (0) target = $region17
    $region16: #{tpu_custom_call.1} parent=1 // pred_region
      %s38 = ssub.s32 16, 16
      %39 = vsyncadd [#allocation6], %s38
      %s41 = sshll.u32 [#allocation5], 4
      %s42 = int_to_ptr.vmem [resolvable:$true] %s41
      %44 = dma.hbm_to_vmem [thread:$0]  %s3, 16, %s42, [#allocation6]
    $region17: #{tpu_custom_call.1} parent=1 // pred_fallthru
      _
    // Predicated region
    $region18: #{tpu_custom_call.1} parent=1 // pred_check
      _
    $region19: #{tpu_custom_call.1} parent=1 // pred_check_branch
      %46 = sbr.rel (0) target = $region21
    $region20: #{tpu_custom_call.1} parent=1 // pred_region
      _
    $region21: #{tpu_custom_call.1} parent=1 // pred_fallthru
      _
    // Predicated region
    $region22: #{tpu_custom_call.1} parent=1 // pred_check
      _
    $region23: #{tpu_custom_call.1} parent=1 // pred_check_branch
      %48 = sbr.rel (0) target = $region25
    $region24: #{tpu_custom_call.1} parent=1 // pred_region
      _
    $region25: #{tpu_custom_call.1} parent=1 // pred_fallthru
      _
    // Predicated region
    $region26: #{tpu_custom_call.1} parent=1 // pred_check
      _
    $region27: #{tpu_custom_call.1} parent=1 // pred_check_branch
      %50 = sbr.rel (0) target = $region29
    $region28: #{tpu_custom_call.1} parent=1 // pred_region
      _
    $region29: #{tpu_custom_call.1} parent=1 // pred_fallthru
      _
    // Predicated region
    $region30: #{tpu_custom_call.1} parent=1 // pred_check
      _
    $region31: #{tpu_custom_call.1} parent=1 // pred_check_branch
      %52 = sbr.rel (0) target = $region33
    $region32: #{tpu_custom_call.1} parent=1 // pred_region
      _
    $region33: #{tpu_custom_call.1} parent=1 // pred_fallthru
      _
    // Predicated region
    $region34: #{tpu_custom_call.1} parent=1 // pred_check
      _
    $region35: #{tpu_custom_call.1} parent=1 // pred_check_branch
      %54 = sbr.rel (0) target = $region37
    $region36: #{tpu_custom_call.1} parent=1 // pred_region
      _
    $region37: #{tpu_custom_call.1} parent=1 // pred_fallthru
      _
    // Predicated region
    $region38: #{tpu_custom_call.1} parent=1 // pred_check
      _
    $region39: #{tpu_custom_call.1} parent=1 // pred_check_branch
      %56 = sbr.rel (0) target = $region41
    $region40: #{tpu_custom_call.1} parent=1 // pred_region
      _
    $region41: #{tpu_custom_call.1} parent=1 // pred_fallthru
      _
    // Predicated region
    $region42: #{tpu_custom_call.1} parent=1 // pred_check
      _
    $region43: #{tpu_custom_call.1} parent=1 // pred_check_branch
      %58 = sbr.rel (0) target = $region45
    $region44: #{tpu_custom_call.1} parent=1 // pred_region
      %59 = dma.done [#allocation3], 32
    $region45: #{tpu_custom_call.1} parent=1 // pred_fallthru
      _
    // Predicated region
    $region46: #{tpu_custom_call.1} parent=1 // pred_check
      _
    $region47: #{tpu_custom_call.1} parent=1 // pred_check_branch
      %61 = sbr.rel (0) target = $region49
    $region48: #{tpu_custom_call.1} parent=1 // pred_region
      %62 = dma.done [#allocation6], 16
    $region49: #{tpu_custom_call.1} parent=1 // pred_fallthru
      _
    %v63 = vld [vmem:[%s8] sm:$0x1]
    %v64 = vunpack.c.0.s8 %v63
    %v65 = vcvt.s32.f32 %v64
    %v66 = vld [vmem:[%s9] sm:$0x1]
    %v67 = vunpack.c.0.s8 %v66
    %v68 = vcvt.s32.f32 %v67
    %v69 = vld [vmem:[#allocation2] sm:$0x3]
    %v70 = vld [vmem:[%s1] sm:$0x1]
    %v71 = vunpack.c.0.s8 %v70
    %v72 = vcvt.s32.f32 %v71
    %vm73 = vcmp.gt.f32.partialorder %v72, 0.5
    %v74 = vsub.f32 1.0, %v69
    %v75 = vsel %vm73, %v69, %v74
    %v76 = vlog2.pop %v75
    %v77 = vmul.f32 %v76, 0.6931472
    %v78 = vsub.f32 0.0, %v77
    %v79 = vmin.f32 %v78, 100.0
    %v80 = vld [vmem:[%s2] sm:$0x3]
    %v81 = vld [vmem:[#allocation5] sm:$0x1]
    %v82 = vunpack.c.0.s8 %v81
    %v83 = vcvt.s32.f32 %v82
    %vm84 = vcmp.gt.f32.partialorder %v83, 0.5
    %v85 = vsub.f32 1.0, %v80
    %v86 = vsel %vm84, %v80, %v85
    %v87 = vlog2.pop %v86
    %v88 = vmul.f32 %v87, 0.6931472
    %v89 = vsub.f32 0.0, %v88
    %v90 = vmin.f32 %v89, 100.0
    %v91 = vadd.f32 %v79, %v90
    %v92 = vld [vmem:[%s4] sm:$0x3]
    %v93 = vld [vmem:[%s5] sm:$0x1]
    %v94 = vunpack.c.0.s8 %v93
    %v95 = vcvt.s32.f32 %v94
    %vm96 = vcmp.gt.f32.partialorder %v95, 0.5
    %v97 = vsub.f32 1.0, %v92
    %v98 = vsel %vm96, %v92, %v97
    %v99 = vlog2.pop %v98
    %v100 = vmul.f32 %v99, 0.6931472
    %v101 = vsub.f32 0.0, %v100
    %v102 = vmin.f32 %v101, 100.0
    %v103 = vld [vmem:[%s6] sm:$0x3]
    %v104 = vld [vmem:[%s7] sm:$0x1]
    %v105 = vunpack.c.0.s8 %v104
    %v106 = vcvt.s32.f32 %v105
    %vm107 = vcmp.gt.f32.partialorder %v106, 0.5
    %v108 = vsub.f32 1.0, %v103
    %v109 = vsel %vm107, %v103, %v108
    %v110 = vlog2.pop %v109
    %v111 = vmul.f32 %v110, 0.6931472
    %v112 = vsub.f32 0.0, %v111
    %v113 = vmin.f32 %v112, 100.0
    %v114 = vadd.f32 %v102, %v113
    %v115 = vmul.f32 %v91, %v65
    %vm116 = vcmask 58368
    %v117 = vsel %vm116, %v115, 0.0
    %118 = vadd.xlane.f32.xlu0 %v117
    %v119 = vpop.xlane.xlu0 %118
    %v120 = vrot.slane %v119, 4
    %v121 = vadd.f32 %v119, %v120
    %v122 = vrot.slane %v121, 2
    %v123 = vadd.f32 %v121, %v122
    %v124 = vrot.slane %v123, 1
    %v125 = vadd.f32 %v123, %v124
    %s126 = vtos %v125
    %v127 = vmul.f32 %v114, %v68
    %vm128 = vcmask 254976
    %v129 = vsel %vm128, %v127, 0.0
    %130 = vadd.xlane.f32.xlu0 %v129
    %v131 = vpop.xlane.xlu0 %130
    %v132 = vrot.slane %v131, 4
    %v133 = vadd.f32 %v131, %v132
    %v134 = vrot.slane %v133, 2
    %v135 = vadd.f32 %v133, %v134
    %v136 = vrot.slane %v135, 1
    %v137 = vadd.f32 %v135, %v136
    %s138 = vtos %v137
    %s139 = sadd.f32 %s126, %s138
    %v140 = vsel %vm116, %v65, 0.0
    %141 = vadd.xlane.f32.xlu0 %v140
    %v142 = vpop.xlane.xlu0 %141
    %v143 = vrot.slane %v142, 4
    %v144 = vadd.f32 %v142, %v143
    %v145 = vrot.slane %v144, 2
    %v146 = vadd.f32 %v144, %v145
    %v147 = vrot.slane %v146, 1
    %v148 = vadd.f32 %v146, %v147
    %s149 = vtos %v148
    %v150 = vstv %s139
    %151 = vst [vmem:[#allocation7] sm:$0x1] %v150
    %v152 = vstv %s149
    %153 = vst [vmem:[#allocation8] sm:$0x1] %v152
    // Predicated region
    $region50: #{tpu_custom_call.1} parent=1 // pred_check
      _
    $region51: #{tpu_custom_call.1} parent=1 // pred_check_branch
      %155 = sbr.rel (0) target = $region53
    $region52: #{tpu_custom_call.1} parent=1 // pred_region
      %s157 = ssub.s32 16, 16
      %158 = vsyncadd [#allocation4], %s157
      %s160 = sshll.u32 [#allocation7], 4
      %s161 = int_to_ptr.vmem [resolvable:$true] %s160
      %163 = dma.vmem_to_hbm [thread:$0]  %s161, 16, %s10, [#allocation4]
    $region53: #{tpu_custom_call.1} parent=1 // pred_fallthru
      _
    // Predicated region
    $region54: #{tpu_custom_call.1} parent=1 // pred_check
      _
    $region55: #{tpu_custom_call.1} parent=1 // pred_check_branch
      %165 = sbr.rel (0) target = $region57
    $region56: #{tpu_custom_call.1} parent=1 // pred_region
      %s167 = ssub.s32 16, 16
      %168 = vsyncadd [#allocation9], %s167
      %s170 = sshll.u32 [#allocation8], 4
      %s171 = int_to_ptr.vmem [resolvable:$true] %s170
      %173 = dma.vmem_to_hbm [thread:$0]  %s171, 16, %s11, [#allocation9]
    $region57: #{tpu_custom_call.1} parent=1 // pred_fallthru
      _
    // Predicated region
    $region58: #{tpu_custom_call.1} parent=1 // pred_check
      _
    $region59: #{tpu_custom_call.1} parent=1 // pred_check_branch
      %175 = sbr.rel (0) target = $region61
    $region60: #{tpu_custom_call.1} parent=1 // pred_region
      %176 = dma.done [#allocation4], 16
    $region61: #{tpu_custom_call.1} parent=1 // pred_fallthru
      _
    // Predicated region
    $region62: #{tpu_custom_call.1} parent=1 // pred_check
      _
    $region63: #{tpu_custom_call.1} parent=1 // pred_check_branch
      %178 = sbr.rel (0) target = $region65
    $region64: #{tpu_custom_call.1} parent=1 // pred_region
      %179 = dma.done [#allocation9], 16
    $region65: #{tpu_custom_call.1} parent=1 // pred_fallthru
      _
    %180 = vsyncpa [#allocation3], 1
    %181 = vsyncpa [#allocation6], 1
    %182 = vsyncpa [#allocation4], 1
    %183 = vsyncpa [#allocation9], 1

</llo_original>
